<compile_context>
chip_gen: v7x
topology: tpu7x:2x2x1
jax: 0.10.0
libtpu: 0.0.40
codegen_flags: <defaults>
</compile_context>

<pallas_src>
import functools

import jax
import jax.numpy as jnp
from jax import lax
from jax.experimental import pallas as pl
from jax.experimental.pallas import tpu as pltpu


# ----------------------------------------------------------------------------
# helpers
# ----------------------------------------------------------------------------
def _lane_tile(n):
    """Largest lane tile in {512,256,128} dividing n with >=2 grid steps.

    Keeps stores lane-dense (multiple of 128) and leaves a parallel grid axis
    so v7x megacore can split work; falls back to the full extent otherwise.
    """
    if n % 128 != 0:
        return n
    for t in (512, 256, 128):
        if n % t == 0 and n // t >= 2:
            return t
    return n


# ----------------------------------------------------------------------------
# Pallas kernels
# ----------------------------------------------------------------------------
def conv1x1_kernel(x_ref, w_ref, b_ref, o_ref):
    # x_ref: (Cin, TN) bf16, w_ref: (Cout, Cin) bf16, b_ref: (Cout, 1) f32
    y = jnp.dot(w_ref[...], x_ref[...],
                preferred_element_type=jnp.float32) + b_ref[...]
    o_ref[...] = y.astype(o_ref.dtype)


def conv1x1_lanes(x_flat, w, b):
    """1x1 conv on a lane-collapsed slab.  x_flat: (Cin, B*H*W) -> (Cout, B*H*W)."""
    Cin, Nt = x_flat.shape
    Cout = w.shape[0]
    tn = _lane_tile(Nt)
    grid = (Nt // tn,)
    return pl.pallas_call(
        conv1x1_kernel,
        out_shape=jax.ShapeDtypeStruct((Cout, Nt), jnp.float32),
        grid=grid,
        in_specs=[
            pl.BlockSpec((Cin, tn), lambda t: (0, t)),
            pl.BlockSpec((Cout, Cin), lambda t: (0, 0)),
            pl.BlockSpec((Cout, 1), lambda t: (0, 0)),
        ],
        out_specs=pl.BlockSpec((Cout, tn), lambda t: (0, t)),
        compiler_params=pltpu.CompilerParams(dimension_semantics=("parallel",)),
    )(x_flat.astype(jnp.bfloat16), w.astype(jnp.bfloat16),
      b.reshape(Cout, 1).astype(jnp.float32))


def depth_fuse_kernel(dep_ref, feat_ref, o_ref, *, num_bins):
    # dep_ref: (1, TN) depth map, feat_ref: (C, TN) camera features
    # o_ref:   (C, D, TN) = softmax-over-bins(depth logits) x features
    dep = dep_ref[...]
    # torch: ret_dep.unsqueeze(1).long() -> truncation toward zero (depth >= 4)
    dep_i = dep.astype(jnp.int32).astype(jnp.float32)                  # (1, TN)
    D = num_bins
    # torch.linspace(4, 74, 71): step == (74-4)/(D-1) == 1.0 for D == 71
    step = (74.0 - 4.0) / (D - 1)
    bins = 4.0 + step * lax.broadcasted_iota(jnp.float32, (D, 1), 0)   # (D, 1)
    logits = -((dep_i - bins) ** 2) * 5.0                              # == /0.2
    m = jnp.max(logits, axis=0, keepdims=True)
    e = jnp.exp(logits - m)
    p = e * pl.reciprocal(jnp.sum(e, axis=0, keepdims=True), approx=True)
    feat = feat_ref[...]                                               # (C, TN)
    o_ref[...] = (feat[:, None, :] * p[None, :, :]).astype(o_ref.dtype)


def depth_fuse(dep_flat, feat_flat, num_bins):
    """dep_flat: (1, Nt), feat_flat: (C, Nt) -> (C, num_bins, Nt)  (Nt = B*h*w)."""
    C, Nt = feat_flat.shape
    tn = _lane_tile(Nt)
    # Output block (C, D, tn) is double buffered; tn <= 512 keeps it well under
    # ~10 MiB, inside the scoped-VMEM budget on v5e/v6e/v7x.
    grid = (Nt // tn,)
    return pl.pallas_call(
        functools.partial(depth_fuse_kernel, num_bins=num_bins),
        out_shape=jax.ShapeDtypeStruct((C, num_bins, Nt), jnp.float32),
        grid=grid,
        in_specs=[
            pl.BlockSpec((1, tn), lambda t: (0, t)),
            pl.BlockSpec((C, tn), lambda t: (0, t)),
        ],
        out_specs=pl.BlockSpec((C, num_bins, tn), lambda t: (0, 0, t)),
        compiler_params=pltpu.CompilerParams(
            dimension_semantics=("parallel",),
            vmem_limit_bytes=32 * 1024 * 1024),
    )(dep_flat.astype(jnp.float32), feat_flat.astype(jnp.float32))


def sum_attention_kernel(rad_ref, cam_ref, wqr_ref, bqr_ref, wkc_ref, bkc_ref,
                         woc_ref, wor_ref, bo_ref, o_ref, *, c_m, c_n):
    # rad_ref: (c_m, N) aligned radar features of one example (bf16)
    # cam_ref: (c_n, N) aligned camera features of one example (bf16)
    # wqr/bqr: stacked [convQ; convR] weights, wkc/bkc: stacked [convK; convC]
    # woc/wor/bo: reconstruct conv folded with the msk/ht heads
    # o_ref:   (4, N) = [msk(2); ht(2)]
    rad = rad_ref[...]
    cam = cam_ref[...]
    qr = jnp.dot(wqr_ref[...], rad, preferred_element_type=jnp.float32) + bqr_ref[...]
    kc = jnp.dot(wkc_ref[...], cam, preferred_element_type=jnp.float32) + bkc_ref[...]
    q = qr[:c_m].astype(jnp.bfloat16)          # (c_m, N)
    r = qr[c_m:].astype(jnp.bfloat16)          # (c_m, N)
    k = kc[:c_n].astype(jnp.bfloat16)          # (c_n, N)
    c = kc[c_n:].astype(jnp.bfloat16)          # (c_n, N)

    g = jnp.dot(q, k.T, preferred_element_type=jnp.float32)   # (c_m, c_n)

    # torch: G = bmm(Q, K^T) has shape (b, c_m, c_n);
    #   F.softmax(G, dim=1)      -> normalize over c_m  == axis 0 of the 2-D slice
    #   F.softmax(G^T, dim=1)    -> normalize over c_n  == axis 0 of G^T
    def softmax_ax0(x):
        m = jnp.max(x, axis=0, keepdims=True)
        e = jnp.exp(x - m)
        return e * pl.reciprocal(jnp.sum(e, axis=0, keepdims=True), approx=True)

    a_c = softmax_ax0(g).astype(jnp.bfloat16)      # (c_m, c_n)
    a_r = softmax_ax0(g.T).astype(jnp.bfloat16)    # (c_n, c_m)

    z1 = jnp.dot(a_c, c, preferred_element_type=jnp.float32)  # (c_m, N)
    z2 = jnp.dot(a_r, r, preferred_element_type=jnp.float32)  # (c_n, N)

    # folded reconstruct + heads: out = W_heads @ (W_rec @ [z1; z2] + b_rec) + b_heads
    out = (jnp.dot(woc_ref[...], z1.astype(jnp.bfloat16),
                   preferred_element_type=jnp.float32)
           + jnp.dot(wor_ref[...], z2.astype(jnp.bfloat16),
                     preferred_element_type=jnp.float32)
           + bo_ref[...])
    o_ref[...] = out.astype(o_ref.dtype)


def sum_attention_fused(rad_flat, cam_flat, w_qr, b_qr, w_kc, b_kc,
                        w_out_c, w_out_r, b_out, *, B, N):
    """rad_flat: (c_m, B*N), cam_flat: (c_n, B*N) -> (4, B*N) [msk(2); ht(2)]."""
    c_m = rad_flat.shape[0]
    c_n = cam_flat.shape[0]
    n_out = w_out_c.shape[0]
    return pl.pallas_call(
        functools.partial(sum_attention_kernel, c_m=c_m, c_n=c_n),
        out_shape=jax.ShapeDtypeStruct((n_out, B * N), jnp.float32),
        grid=(B,),
        in_specs=[
            pl.BlockSpec((c_m, N), lambda b: (0, b)),
            pl.BlockSpec((c_n, N), lambda b: (0, b)),
            pl.BlockSpec((2 * c_m, c_m), lambda b: (0, 0)),
            pl.BlockSpec((2 * c_m, 1), lambda b: (0, 0)),
            pl.BlockSpec((2 * c_n, c_n), lambda b: (0, 0)),
            pl.BlockSpec((2 * c_n, 1), lambda b: (0, 0)),
            pl.BlockSpec((n_out, c_m), lambda b: (0, 0)),
            pl.BlockSpec((n_out, c_n), lambda b: (0, 0)),
            pl.BlockSpec((n_out, 1), lambda b: (0, 0)),
        ],
        out_specs=pl.BlockSpec((n_out, N), lambda b: (0, b)),
        compiler_params=pltpu.CompilerParams(dimension_semantics=("parallel",)),
    )(rad_flat.astype(jnp.bfloat16), cam_flat.astype(jnp.bfloat16),
      w_qr.astype(jnp.bfloat16), b_qr.reshape(-1, 1).astype(jnp.float32),
      w_kc.astype(jnp.bfloat16), b_kc.reshape(-1, 1).astype(jnp.float32),
      w_out_c.astype(jnp.bfloat16), w_out_r.astype(jnp.bfloat16),
      b_out.reshape(-1, 1).astype(jnp.float32))


# ----------------------------------------------------------------------------
# Plain-JAX glue (geometry, voxel scatter, parameter setup)
# ----------------------------------------------------------------------------
def gen_dx_bx(xbound, ybound, zbound):
    dx = jnp.array([row[2] for row in (xbound, ybound, zbound)], dtype=jnp.float32)
    bx = jnp.array([row[0] + row[2] / 2.0 for row in (xbound, ybound, zbound)],
                   dtype=jnp.float32)
    nx = [int((row[1] - row[0]) / row[2]) for row in (xbound, ybound, zbound)]
    return dx, bx, nx


def create_frustum(final_dim, dbound, downsample):
    ogfH, ogfW = final_dim
    fH, fW = ogfH // downsample, ogfW // downsample
    ds = jnp.arange(dbound[0], dbound[1], dbound[2], dtype=jnp.float32)
    D = ds.shape[0]
    ds = jnp.broadcast_to(ds.reshape(D, 1, 1), (D, fH, fW))
    xs = jnp.broadcast_to(jnp.linspace(0.0, ogfW - 1, fW).reshape(1, 1, fW), (D, fH, fW))
    ys = jnp.broadcast_to(jnp.linspace(0.0, ogfH - 1, fH).reshape(1, fH, 1), (D, fH, fW))
    return jnp.stack([xs, ys, ds], axis=-1)  # (D, fH, fW, 3)


def get_geometry(frustum, intrinsic_inv, extrinsic_inv, B):
    D, H, W, _ = frustum.shape
    pts = jnp.broadcast_to(frustum[None], (B, D, H, W, 3))
    uvd = jnp.stack(
        [pts[..., 0] * pts[..., 2], pts[..., 1] * pts[..., 2], pts[..., 2]], axis=-1)
    uvz = jnp.einsum("bij,bdhwj->bdhwi", intrinsic_inv, uvd)
    uvz1 = jnp.concatenate([uvz, jnp.ones_like(uvz[..., :1])], axis=-1)
    xyz1 = jnp.einsum("bij,bdhwj->bdhwi", extrinsic_inv, uvz1)
    return xyz1[..., :3]


def voxel_pooling_cfirst(flat_idx, valid, feats_cdbn, nx):
    """Scatter-add channel-first depth-fused features onto the BEV grid.

    flat_idx, valid : (D, B, N)   feats_cdbn : (C, D, B, N)
    returns (C, B, nx0, nx1).
    """
    # TODO(synk): external `voxel_pooling` CUDA op replaced by an XLA
    # scatter-add (data-dependent scatter; no clean Pallas TPU equivalent).
    C = feats_cdbn.shape[0]
    D, B, N = flat_idx.shape
    nx0, nx1, nx2 = nx
    vals = jnp.where(valid[None], feats_cdbn, 0.0)
    out = jnp.zeros((C, B, nx0 * nx1), jnp.float32)
    c_idx = jnp.arange(C)[:, None, None, None]
    b_idx = jnp.arange(B)[None, None, :, None]
    out = out.at[c_idx, b_idx, flat_idx[None]].add(vals)
    return out.reshape(C, B, nx0, nx1)


def init_params(key, camC=32, radC=32):
    names_shapes = {
        # CamEncode featurenet stand-in (TODO(synk): EfficientNet trunk omitted)
        "w_feat": (camC, 3), "b_feat": (camC,),
        # RadarEncode stand-in (TODO(synk): resnet34 trunk omitted), outC = radC + 8
        "w_rad": (radC + 8, 2), "b_rad": (radC + 8,),
        # align convs
        "w_ralign": (32, 32), "b_ralign": (32,),
        "w_calign": (32, 32), "b_calign": (32,),
        # SumAttention 1x1 convs
        "w_q": (radC, radC), "b_q": (radC,),
        "w_k": (camC, camC), "b_k": (camC,),
        "w_c": (camC, camC), "b_c": (camC,),
        "w_r": (radC, radC), "b_r": (radC,),
        "w_rec": (32, radC + camC), "b_rec": (32,),
        # BevEncode stand-in heads (TODO(synk): resnet34 trunk + Up blocks omitted)
        "w_msk": (2, 32), "b_msk": (2,),
        "w_ht": (2, 32), "b_ht": (2,),
    }
    params = {}
    keys = jax.random.split(key, len(names_shapes))
    for (name, shape), k in zip(sorted(names_shapes.items()), keys):
        if name.startswith("b_"):
            params[name] = jnp.zeros(shape, jnp.float32)
        else:
            params[name] = 0.1 * jax.random.normal(k, shape, jnp.float32)
    return params


# ----------------------------------------------------------------------------
# RadarPts forward
# ----------------------------------------------------------------------------
def radar_pts_forward(params, consts, imgs, radarMaps, intrinsic_inv,
                      extrinsic_inv, ret_dep):
    frustum, dx, bx, nx = consts
    nx0, nx1, nx2 = nx
    B = imgs.shape[0]
    D = frustum.shape[0]
    camC = params["w_feat"].shape[0]
    c_m = params["w_q"].shape[0]

    # ---- fold consecutive 1x1 convs (tiny weight-space matmuls, plain JAX) ---
    # radar_features = ralign(RadarEncode(radarMaps)[:32])
    w_radfold = params["w_ralign"] @ params["w_rad"][:32]                 # (32, 2)
    b_radfold = params["w_ralign"] @ params["b_rad"][:32] + params["b_ralign"]
    # stacked Q/R (applied to aligned radar) and K/C (applied to aligned camera)
    w_qr = jnp.concatenate([params["w_q"], params["w_r"]], axis=0)        # (64, 32)
    b_qr = jnp.concatenate([params["b_q"], params["b_r"]], axis=0)
    w_kc = jnp.concatenate([params["w_k"], params["w_c"]], axis=0)        # (64, 32)
    b_kc = jnp.concatenate([params["b_k"], params["b_c"]], axis=0)
    # reconstruct conv folded with the msk/ht heads: (4, 64) projection of tmpZ
    w_heads = jnp.concatenate([params["w_msk"], params["w_ht"]], axis=0)  # (4, 32)
    b_heads = jnp.concatenate([params["b_msk"], params["b_ht"]], axis=0)
    w_out = w_heads @ params["w_rec"]                                     # (4, 64)
    b_out = w_heads @ params["b_rec"] + b_heads
    w_out_c = w_out[:, :c_m]     # multiplies z1 = softmax(G) @ C
    w_out_r = w_out[:, c_m:]     # multiplies z2 = softmax(G^T) @ R

    # ---- camera branch: get_voxels -------------------------------------------
    geom = get_geometry(frustum, intrinsic_inv, extrinsic_inv, B)     # (B,D,h,w,3)

    Bi, Ci, Hi, Wi = imgs.shape
    h, w_sp = Hi // 2, Wi // 2
    # CamEncode feature stand-in: avg-pool by downsample + 1x1 conv (Pallas)
    pooled = imgs.reshape(Bi, Ci, h, 2, w_sp, 2).mean(axis=(3, 5))    # (B,3,h,w)
    pooled_cb = pooled.transpose(1, 0, 2, 3).reshape(Ci, Bi * h * w_sp)
    feature_flat = conv1x1_lanes(pooled_cb, params["w_feat"], params["b_feat"])

    # depth logits + softmax over bins + outer product with features (Pallas);
    # output stays channel-first with the spatial axis last (lane dense) so no
    # transpose of the largest intermediate is needed.
    dep_flat = ret_dep.reshape(1, B * h * w_sp)
    fused = depth_fuse(dep_flat, feature_flat, D)                     # (C, D, B*h*w)
    feats_cdbn = fused.reshape(camC, D, B, h * w_sp)

    # VoxelPooling (channel-first consumer of the depth-fused features)
    geom_q = ((geom - (bx - dx / 2.0)) / dx).astype(jnp.int32)        # (B,D,h,w,3)
    gx, gy, gz = geom_q[..., 0], geom_q[..., 1], geom_q[..., 2]
    valid = ((gx >= 0) & (gx < nx0) & (gy >= 0) & (gy < nx1)
             & (gz >= 0) & (gz < nx2))
    gx = jnp.clip(gx, 0, nx0 - 1)
    gy = jnp.clip(gy, 0, nx1 - 1)
    # flat BEV index; z is collapsed (valid mask already enforces nx2 == 1 here)
    flat_idx = (gx * nx1 + gy).reshape(B, D, h * w_sp).transpose(1, 0, 2)
    valid_t = valid.reshape(B, D, h * w_sp).transpose(1, 0, 2)
    img_features = voxel_pooling_cfirst(flat_idx, valid_t, feats_cdbn, nx)
    # img_features: (camC, B, nx0, nx1)

    # ---- radar branch + affinity propagation ---------------------------------
    # TODO(synk): Affinity_Propagate (CSPN) has no definition here; identity
    # propagation is used, so the 8 affinity channels of the RadarEncode
    # stand-in are folded away as unused.
    Br, Cr, Hr, Wr = radarMaps.shape
    assert Hr * Wr == nx0 * nx1, "radar map resolution must match the BEV grid"
    radar_cb = radarMaps.transpose(1, 0, 2, 3).reshape(Cr, Br * Hr * Wr)
    radar_aligned_flat = conv1x1_lanes(radar_cb, w_radfold, b_radfold)   # (32, B*N)

    cam_flat = img_features.reshape(camC, B * nx0 * nx1)
    cam_aligned_flat = conv1x1_lanes(cam_flat, params["w_calign"], params["b_calign"])

    # ---- SumAttention + reconstruct + BevEncoder heads (one fused kernel) ----
    Nbev = nx0 * nx1
    heads_flat = sum_attention_fused(
        radar_aligned_flat, cam_aligned_flat,
        w_qr, b_qr, w_kc, b_kc, w_out_c, w_out_r, b_out, B=B, N=Nbev)    # (4, B*N)

    # ---- back to NCHW only at the module boundary -----------------------------
    heads = heads_flat.reshape(4, B, nx0, nx1).transpose(1, 0, 2, 3)     # (B,4,H,W)
    msk = heads[:, :2]
    ht = heads[:, 2:]
    radar_features = radar_aligned_flat.reshape(32, B, Hr, Wr).transpose(1, 0, 2, 3)
    cam_features = cam_aligned_flat.reshape(camC, B, nx0, nx1).transpose(1, 0, 2, 3)
    return msk, ht, radar_features, cam_features


# ----------------------------------------------------------------------------
if __name__ == "__main__":
    key = jax.random.PRNGKey(0)

    # configuration (small, consistent with the module)
    grid_conf = {
        "xbound": [-50.0, 50.0, 6.25],   # -> 16 BEV cells
        "ybound": [-50.0, 50.0, 6.25],   # -> 16 BEV cells
        "zbound": [-10.0, 10.0, 20.0],   # -> 1 cell
        "dbound": [4.0, 75.0, 1.0],      # -> D = 71 depth bins (== linspace(4,74,71))
    }
    data_aug_conf = {"final_dim": (16, 16)}
    downsample = 2

    dx, bx, nx = gen_dx_bx(grid_conf["xbound"], grid_conf["ybound"], grid_conf["zbound"])
    frustum = create_frustum(data_aug_conf["final_dim"], grid_conf["dbound"], downsample)
    consts = (frustum, dx, bx, nx)

    params = init_params(key)

    B = 2
    k1, k2, k3 = jax.random.split(key, 3)
    imgs = jax.random.normal(k1, (B, 3, 16, 16), jnp.float32)
    radarMaps = jax.random.normal(k2, (B, 2, 16, 16), jnp.float32)
    # simple pinhole intrinsic inverse (f=8, c=8) and identity extrinsic inverse
    K_inv = jnp.array([[1.0 / 8.0, 0.0, -1.0],
                       [0.0, 1.0 / 8.0, -1.0],
                       [0.0, 0.0, 1.0]], jnp.float32)
    intrinsic_inv = jnp.broadcast_to(K_inv, (B, 3, 3))
    extrinsic_inv = jnp.broadcast_to(jnp.eye(4, dtype=jnp.float32), (B, 4, 4))
    ret_dep = 4.0 + 46.0 * jax.random.uniform(k3, (B, 8, 8), jnp.float32)

    msk, ht, radar_features, cam_features = radar_pts_forward(
        params, consts, imgs, radarMaps, intrinsic_inv, extrinsic_inv, ret_dep)

    jax.block_until_ready((msk, ht, radar_features, cam_features))
    assert msk.shape == (B, 2, 16, 16)
    assert ht.shape == (B, 2, 16, 16)
    assert radar_features.shape == (B, 32, 16, 16)
    assert cam_features.shape == (B, 32, 16, 16)
    assert bool(jnp.all(jnp.isfinite(msk))) and bool(jnp.all(jnp.isfinite(ht)))
    print("KERNEL_OK")
</pallas_src>

<mosaic_0001>
module attributes {stable_mosaic.version = 11 : i64} {
  func.func @conv1x1_kernel(%arg0: i32, %arg1: memref<3x128xbf16, #tpu.memory_space<vmem>>, %arg2: memref<32x3xbf16, #tpu.memory_space<vmem>>, %arg3: memref<32x1xf32, #tpu.memory_space<vmem>>, %arg4: memref<32x128xf32, #tpu.memory_space<vmem>>) attributes {dimension_semantics = [#tpu.dimension_semantics<parallel>], iteration_bounds = array<i64: 1>, scalar_prefetch = 0 : i64, scratch_operands = 0 : i64, tpu.core_type = #tpu.core_type<tc>, window_params = [{transform_indices = @transform_0, window_bounds = array<i64: 3, 128>}, {pipeline_mode = #tpu.pipeline_mode<synchronous>, transform_indices = @transform_1, window_bounds = array<i64: 32, 3>}, {pipeline_mode = #tpu.pipeline_mode<synchronous>, transform_indices = @transform_2, window_bounds = array<i64: 32, 1>}, {transform_indices = @transform_3, window_bounds = array<i64: 32, 128>}]} {
    %c0 = arith.constant 0 : index
    %c0_0 = arith.constant 0 : index
    %0 = vector.load %arg2[%c0, %c0_0] : memref<32x3xbf16, #tpu.memory_space<vmem>>, vector<32x3xbf16>
    %c0_1 = arith.constant 0 : index
    %c0_2 = arith.constant 0 : index
    %1 = vector.load %arg1[%c0_1, %c0_2] : memref<3x128xbf16, #tpu.memory_space<vmem>>, vector<3x128xbf16>
    %cst = arith.constant dense<0.000000e+00> : vector<32x128xf32>
    %2 = tpu.matmul %0, %1, %cst {dimension_numbers = #tpu.dot_dimension_numbers<[1], [0], [0], [1], [0, 0, 1, 1], [], []>} : vector<32x3xbf16>, vector<3x128xbf16>, vector<32x128xf32> -> vector<32x128xf32>
    %c0_3 = arith.constant 0 : index
    %c0_4 = arith.constant 0 : index
    %3 = vector.load %arg3[%c0_3, %c0_4] : memref<32x1xf32, #tpu.memory_space<vmem>>, vector<32x1xf32>
    %4 = vector.broadcast %3 : vector<32x1xf32> to vector<32x128xf32>
    %5 = arith.addf %2, %4 : vector<32x128xf32>
    %c0_5 = arith.constant 0 : index
    %c0_6 = arith.constant 0 : index
    %6 = vector.load %arg4[%c0_5, %c0_6] : memref<32x128xf32, #tpu.memory_space<vmem>>, vector<32x128xf32>
    tpu.vector_store %arg4[%c0_5, %c0_6], %5 {strides = array<i32>} : memref<32x128xf32, #tpu.memory_space<vmem>>, vector<32x128xf32>,
    return
  }
  func.func @transform_0(%arg0: i32) -> (i32, i32) {
    %c0_i32 = arith.constant 0 : i32
    %c0_i32_0 = arith.constant 0 : i32
    return %c0_i32, %arg0 : i32, i32
  }
  func.func @transform_1(%arg0: i32) -> (i32, i32) {
    %c0_i32 = arith.constant 0 : i32
    %c0_i32_0 = arith.constant 0 : i32
    %c0_i32_1 = arith.constant 0 : i32
    return %c0_i32, %c0_i32_0 : i32, i32
  }
  func.func @transform_2(%arg0: i32) -> (i32, i32) {
    %c0_i32 = arith.constant 0 : i32
    %c0_i32_0 = arith.constant 0 : i32
    %c0_i32_1 = arith.constant 0 : i32
    return %c0_i32, %c0_i32_0 : i32, i32
  }
  func.func @transform_3(%arg0: i32) -> (i32, i32) {
    %c0_i32 = arith.constant 0 : i32
    %c0_i32_0 = arith.constant 0 : i32
    return %c0_i32, %arg0 : i32, i32
  }
}

</mosaic_0001>

<llo_original>
// kernel: tpu_custom_call.1
$region0: #{tpu_custom_call.1}
  #allocation0 [shape = 'u32[]', space=smem, size = 0x4, offset = 0x4, fixed_abs, tag = 'smem constant byte address 0x4 - core index']
  #allocation1 [shape = 'u32[144,128]{1,0:T(1,128)}', space=vmem, size = 0x12000, scoped, tag = 'internal scratch']
  %s0 = inlined_call_operand.vmem [shape: bf16[3,128], index: 0, kind: input, shape index: {}]
  %s1 = inlined_call_operand.vmem [shape: bf16[32,3], index: 1, kind: input, shape index: {}]
  %s2 = inlined_call_operand.vmem [shape: f32[32,1], index: 2, kind: input, shape index: {}]
  %s3 = inlined_call_operand.hbm [shape: f32[32,128], index: 3, kind: output, shape index: {}]
  %s4 = sld [smem:[#allocation0]]
  $region22: #{tpu_custom_call.1} parent=0
    _
  %s6 = ssub.s32 1, %s4
  %s7 = scalar_select 0, %s6, %s4
  $region1: #{tpu_custom_call.1} parent=0
    #allocation2 [shape = 'u8[16384]{0}', space=vmem, size = 0x4000, scoped, tag = 'output window, operand 0, single buffered']
    #allocation3 [shape = 's32[1]{0}', space=sflag, size = 0x4, scoped, tag = 'scoped memory for tpu_custom_call.1']
    %8 = vsyncpa [#allocation3], 0
    // Predicated region
    $region2: #{tpu_custom_call.1} parent=1 // pred_check
      _
    $region3: #{tpu_custom_call.1} parent=1 // pred_check_branch
      %10 = sbr.rel (0) target = $region5
    $region4: #{tpu_custom_call.1} parent=1 // pred_region
      _
    $region5: #{tpu_custom_call.1} parent=1 // pred_fallthru
      _
    // Predicated region
    $region6: #{tpu_custom_call.1} parent=1 // pred_check
      _
    $region7: #{tpu_custom_call.1} parent=1 // pred_check_branch
      %12 = sbr.rel (0) target = $region9
    $region8: #{tpu_custom_call.1} parent=1 // pred_region
      _
    $region9: #{tpu_custom_call.1} parent=1 // pred_fallthru
      _
    // Predicated region
    $region10: #{tpu_custom_call.1} parent=1 // pred_check
      _
    $region11: #{tpu_custom_call.1} parent=1 // pred_check_branch
      %14 = sbr.rel (0) target = $region13
    $region12: #{tpu_custom_call.1} parent=1 // pred_region
      _
    $region13: #{tpu_custom_call.1} parent=1 // pred_fallthru
      _
    %v16 = vld [vmem:[%s1] sm:$0xf]
    %v17 = vld [vmem:[%s1 + $0x4] sm:$0xf]
    %v18 = vld [vmem:[%s1 + $0x8] sm:$0xf]
    %v19 = vld [vmem:[%s1 + $0xc] sm:$0xf]
    %v20 = vld [vmem:[%s0] sm:$0x3]
    %v21 = vld [vmem:[%s2] sm:$0xff]
    %v22 = vld [vmem:[%s2 + $0x8] sm:$0xff]
    %v23 = vld [vmem:[%s2 + $0x10] sm:$0xff]
    %v24 = vld [vmem:[%s2 + $0x18] sm:$0xff]
    %26 = vset.pattern.permute.xlu0 0
    %27 = vperm.xlu0 %26, %v21
    %v28 = vpop.permute.xlu0 %27
    %31 = vset.pattern.permute.xlu0 0
    %32 = vperm.xlu0 %31, %v22
    %v33 = vpop.permute.xlu0 %32
    %36 = vset.pattern.permute.xlu0 0
    %37 = vperm.xlu0 %36, %v23
    %v38 = vpop.permute.xlu0 %37
    %41 = vset.pattern.permute.xlu0 0
    %42 = vperm.xlu0 %41, %v24
    %v43 = vpop.permute.xlu0 %42
    %v49 = vunpack.c.l.b16 %v16
    %v50 = vunpack.c.l.b16 %v17
    %v51 = vunpack.c.l.b16 %v18
    %v52 = vunpack.c.l.b16 %v19
    %v53 = vpack.c.b16 %v50, %v49
    %v54 = vpack.c.b16 %v52, %v51
    %vm55 = vcmask 23552
    %v57 = vsel %vm55, %v53, 0
    %v60 = vsel %vm55, %v54, 0
    %vm62 = vcmask 1040384
    %vm63 = vcmask 1041408
    %v64 = vsel %vm62, 4294967295, 65535
    %v65 = vsel %vm63, %v64, 0
    %v67 = vand.u32 %v20, %v65
    %69 = vmatprep.subr.bf16.mxu0 0
    %70 = vmatpush1.bf16.msra.mxu0 %v67
    %71 = vmatprep.subr.bf16.mxu0 0
    %72 = vmatpush1.bf16.msra.mxu0 0
    %73 = vmatprep.subr.bf16.mxu0 0
    %74 = vmatpush1.bf16.msra.mxu0 0
    %75 = vmatprep.subr.bf16.mxu0 0
    %76 = vmatpush1.bf16.msra.mxu0 0
    %77 = vmatprep.subr.bf16.mxu0 0
    %78 = vmatpush1.bf16.msra.mxu0 0
    %79 = vmatprep.subr.bf16.mxu0 0
    %80 = vmatpush1.bf16.msra.mxu0 0
    %81 = vmatprep.subr.bf16.mxu0 0
    %82 = vmatpush1.bf16.msra.mxu0 0
    %83 = vmatprep.subr.bf16.mxu0 0
    %84 = vmatpush1.bf16.msra.mxu0 0
    %85 = vmatprep.subr.bf16.mxu0 0
    %86 = vmatpush1.bf16.msra.mxu0 0
    %87 = vmatprep.subr.bf16.mxu0 0
    %88 = vmatpush1.bf16.msra.mxu0 0
    %89 = vmatprep.subr.bf16.mxu0 0
    %90 = vmatpush1.bf16.msra.mxu0 0
    %91 = vmatprep.subr.bf16.mxu0 0
    %92 = vmatpush1.bf16.msra.mxu0 0
    %93 = vmatprep.subr.bf16.mxu0 0
    %94 = vmatpush1.bf16.msra.mxu0 0
    %95 = vmatprep.subr.bf16.mxu0 0
    %96 = vmatpush1.bf16.msra.mxu0 0
    %97 = vmatprep.subr.bf16.mxu0 0
    %98 = vmatpush1.bf16.msra.mxu0 0
    %99 = vmatprep.subr.bf16.mxu0 0
    %100 = vmatpush1.bf16.msra.mxu0 0
    %101 = vmatprep.mubr.bf16.mxu0 0
    %102 = vmatmul.mubr.bf16.gmra.mrb[0].mxu0 %v57
    %v103 = vpop.f32.mrb[0].mxu0
    %v104 = vadd.f32 %v28, %v103
    %v105 = vpop.f32.mrb[0].mxu0
    %v106 = vpop.f32.mrb[0].mxu0
    %v107 = vadd.f32 %v33, %v106
    %v108 = vpop.f32.mrb[0].mxu0
    %109 = vmatprep.mubr.bf16.mxu0 0
    %110 = vmatmul.mubr.bf16.gmra.mrb[0].mxu0 %v60
    %v111 = vpop.f32.mrb[0].mxu0
    %v112 = vadd.f32 %v38, %v111
    %v113 = vpop.f32.mrb[0].mxu0
    %v114 = vpop.f32.mrb[0].mxu0
    %v115 = vadd.f32 %v43, %v114
    %v116 = vpop.f32.mrb[0].mxu0
    %117 = vdwg.mxu0
    %118 = vst [vmem:[#allocation2] sm:$0xff] %v104
    %119 = vst [vmem:[#allocation2 + $0x8] sm:$0xff] %v107
    %120 = vst [vmem:[#allocation2 + $0x10] sm:$0xff] %v112
    %121 = vst [vmem:[#allocation2 + $0x18] sm:$0xff] %v115
    // Predicated region
    $region14: #{tpu_custom_call.1} parent=1 // pred_check
      _
    $region15: #{tpu_custom_call.1} parent=1 // pred_check_branch
      %123 = sbr.rel (0) target = $region17
    $region16: #{tpu_custom_call.1} parent=1 // pred_region
      %s125 = ssub.s32 512, 512
      %126 = vsyncadd [#allocation3], %s125
      %s127 = sshll.u32 [#allocation2], 4
      %s128 = int_to_ptr.vmem [resolvable:$true] %s127
      %133 = dma.vmem_to_hbm [thread:$0]  %s128, 512, %s3, [#allocation3], 128, 128, 8
    $region17: #{tpu_custom_call.1} parent=1 // pred_fallthru
      _
    // Predicated region
    $region18: #{tpu_custom_call.1} parent=1 // pred_check
      _
    $region19: #{tpu_custom_call.1} parent=1 // pred_check_branch
      %135 = sbr.rel (0) target = $region21
    $region20: #{tpu_custom_call.1} parent=1 // pred_region
      %136 = dma.done [#allocation3], 512
    $region21: #{tpu_custom_call.1} parent=1 // pred_fallthru
      _
    %137 = vsyncpa [#allocation3], 1

</llo_original>
